<compile_context>
chip_gen: v7x
topology: tpu7x:2x2x1
jax: 0.10.0
libtpu: 0.0.40
codegen_flags: <defaults>
</compile_context>

<pallas_src>
import functools

import jax
import jax.numpy as jnp
from jax.experimental import pallas as pl
from jax.experimental.pallas import tpu as pltpu


def _maxpool_kernel(x_ref, o_ref, pad_ref, rows_ref, *, pool_size, stride, pads):
    """x_ref: (H, W, TB) channels-last block; o_ref: (H_out, W_out, TB)."""
    pad_t, pad_b, pad_l, pad_r = pads
    h, w, _ = x_ref.shape
    out_h, out_w, _ = o_ref.shape

    # Zero-pad inside VMEM (fold ZeroPad2d into the kernel).
    pad_ref[...] = jnp.zeros_like(pad_ref)
    pad_ref[pad_t:pad_t + h, pad_l:pad_l + w, :] = x_ref[...]

    # ---- Pass 1: max over the window rows (outer axis, never the lane axis).
    def row_win(di):
        if stride == 1:
            return pad_ref[di:di + out_h, :, :]
        return pad_ref[pl.ds(di, out_h, stride), :, :]

    acc = row_win(0)                       # init from first window (no -inf fill)
    for di in range(1, pool_size):
        acc = jnp.maximum(acc, row_win(di))
    rows_ref[...] = acc                    # (out_h, W_pad, TB)

    # ---- Pass 2: max over the window cols (sublane axis).
    def col_win(dj):
        if stride == 1:
            return rows_ref[:, dj:dj + out_w, :]
        return rows_ref[:, pl.ds(dj, out_w, stride), :]

    out = col_win(0)
    for dj in range(1, pool_size):
        out = jnp.maximum(out, col_win(dj))
    o_ref[...] = out


def _choose_channel_block(bc, h, w, hp, wp, out_h, out_w, itemsize,
                          budget_bytes=8 * 1024 * 1024):
    """Pick the fused-channel block size TB against a VMEM budget.

    Per-channel VMEM ~ double-buffered input + pad scratch + rows scratch
    + double-buffered output.  Budget is conservative so the same block size
    fits v5e (16 MiB default scoped), v6e (32 MiB) and v7x (64 MiB physical).
    """
    per_ch = (2 * h * w + hp * wp + out_h * wp + 2 * out_h * out_w) * itemsize
    max_tb = max(1, budget_bytes // per_ch)
    if bc <= max_tb:
        return bc, bc                       # single block == full dim (valid)
    tb = max(128, (max_tb // 128) * 128)    # tiled block: lane-aligned multiple of 128
    bc_padded = ((bc + tb - 1) // tb) * tb
    return tb, bc_padded


def _maxpool2d_pallas(x_cl, pool_size, stride, pads, out_h, out_w, tb):
    """x_cl: (H, W, BC) channels-last; BC is a multiple of tb."""
    h, w, bc = x_cl.shape
    pad_t, pad_b, pad_l, pad_r = pads
    hp = h + pad_t + pad_b
    wp = w + pad_l + pad_r
    itemsize = jnp.dtype(x_cl.dtype).itemsize

    kernel = functools.partial(
        _maxpool_kernel, pool_size=pool_size, stride=stride, pads=pads)

    return pl.pallas_call(
        kernel,
        out_shape=jax.ShapeDtypeStruct((out_h, out_w, bc), x_cl.dtype),
        grid=(bc // tb,),
        in_specs=[pl.BlockSpec((h, w, tb), lambda i: (0, 0, i))],
        out_specs=pl.BlockSpec((out_h, out_w, tb), lambda i: (0, 0, i)),
        scratch_shapes=[
            pltpu.VMEM((hp, wp, tb), x_cl.dtype),     # zero-padded map
            pltpu.VMEM((out_h, wp, tb), x_cl.dtype),  # row-pooled intermediate
        ],
        compiler_params=pltpu.CompilerParams(
            dimension_semantics=("parallel",),        # shard across TCs on v7x
            vmem_limit_bytes=32 * 1024 * 1024,
        ),
        cost_estimate=pl.CostEstimate(
            flops=2 * pool_size * out_h * out_w * bc,
            transcendentals=0,
            bytes_accessed=(h * w + out_h * out_w) * bc * itemsize,
        ),
    )(x_cl)


class MaxPoolLayerV1Pallas:
    """JAX/Pallas port of MaxPoolLayerV1 (no learnable parameters)."""

    def __init__(self, stride, pool_size, num_similarity_matrices):
        self.stride = stride
        self.pool_size = pool_size
        self.num_similarity_matrices = num_similarity_matrices
        pt = (pool_size - 1) // 2
        if pool_size % 2 == 0:
            # ZeroPad2d order: (left, right, top, bottom)
            self.pad_l, self.pad_r, self.pad_t, self.pad_b = pt, pt + 1, pt, pt + 1
        else:
            self.pad_l, self.pad_r, self.pad_t, self.pad_b = pt, pt, pt, pt

    def _pool_fused(self, xs):
        """Pool a list of same-shape (N, C, H, W) arrays with one pallas_call."""
        m = len(xs)
        n, c, h, w = xs[0].shape
        bc = m * n * c
        # Fuse all matrices + batch + channels onto a single lane-dense axis.
        x = jnp.stack(xs, axis=0).reshape(bc, h, w)
        x_cl = jnp.transpose(x, (1, 2, 0))            # (H, W, BC)

        hp = h + self.pad_t + self.pad_b
        wp = w + self.pad_l + self.pad_r
        out_h = (hp - self.pool_size) // self.stride + 1
        out_w = (wp - self.pool_size) // self.stride + 1

        itemsize = jnp.dtype(x_cl.dtype).itemsize
        tb, bc_padded = _choose_channel_block(
            bc, h, w, hp, wp, out_h, out_w, itemsize)
        if bc_padded > bc:
            x_cl = jnp.pad(x_cl, ((0, 0), (0, 0), (0, bc_padded - bc)))

        y_cl = _maxpool2d_pallas(
            x_cl, self.pool_size, self.stride,
            (self.pad_t, self.pad_b, self.pad_l, self.pad_r),
            out_h, out_w, tb)

        y = jnp.transpose(y_cl[:, :, :bc], (2, 0, 1))
        y = y.reshape(m, n, c, out_h, out_w)
        return [y[i] for i in range(m)]

    def __call__(self, similarity_matrices_list):
        m = self.num_similarity_matrices
        xs = list(similarity_matrices_list[:m])
        results = [None] * m
        # Group equal-shape/dtype matrices so each group fuses into one launch.
        groups = {}
        for idx, x in enumerate(xs):
            groups.setdefault((tuple(x.shape), jnp.dtype(x.dtype)), []).append(idx)
        for _, idxs in groups.items():
            pooled = self._pool_fused([xs[i] for i in idxs])
            for i, y in zip(idxs, pooled):
                results[i] = y
        return results


def _reference_maxpool(x, pool_size, stride, pads):
    """Pure-JAX reference (reduce_window over the zero-padded input)."""
    pad_l, pad_r, pad_t, pad_b = pads
    x_pad = jnp.pad(
        x, ((0, 0), (0, 0), (pad_t, pad_b), (pad_l, pad_r)),
        mode="constant", constant_values=0.0,
    )
    return jax.lax.reduce_window(
        x_pad, -jnp.inf, jax.lax.max,
        window_dimensions=(1, 1, pool_size, pool_size),
        window_strides=(1, 1, stride, stride),
        padding="VALID",
    )


if __name__ == "__main__":
    key = jax.random.PRNGKey(0)
    num_similarity_matrices = 3
    batch, channels, spatial = 2, 4, 16

    keys = jax.random.split(key, num_similarity_matrices)
    sims = [
        jax.random.normal(k, (batch, channels, spatial, spatial), dtype=jnp.float32)
        for k in keys
    ]

    # Check both an odd pool (symmetric pad, stride 1) and an even pool
    # (asymmetric pad, stride 2) configuration against the pure-JAX reference.
    for pool_size, stride in [(3, 1), (4, 2)]:
        layer = MaxPoolLayerV1Pallas(stride, pool_size, num_similarity_matrices)
        outs = layer(sims)
        outs = [jax.block_until_ready(o) for o in outs]
        pads = (layer.pad_l, layer.pad_r, layer.pad_t, layer.pad_b)
        for x, y in zip(sims, outs):
            ref = _reference_maxpool(x, pool_size, stride, pads)
            assert y.shape == ref.shape, (y.shape, ref.shape)
            assert jnp.allclose(y, ref), (
                f"mismatch vs reference max-pool (P={pool_size}, s={stride})")

    print("KERNEL_OK")
</pallas_src>

<mosaic_0001>
module attributes {stable_mosaic.version = 11 : i64} {
  func.func @_maxpool_kernel(%arg0: i32, %arg1: memref<16x16x24xf32, #tpu.memory_space<vmem>>, %arg2: memref<16x16x24xf32, #tpu.memory_space<vmem>>, %arg3: memref<18x18x24xf32, #tpu.memory_space<vmem>>, %arg4: memref<16x18x24xf32, #tpu.memory_space<vmem>>) attributes {dimension_semantics = [#tpu.dimension_semantics<parallel>], iteration_bounds = array<i64: 1>, scalar_prefetch = 0 : i64, scratch_operands = 2 : i64, tpu.core_type = #tpu.core_type<tc>, window_params = [{transform_indices = @transform_0, window_bounds = array<i64: 16, 16, 24>}, {transform_indices = @transform_1, window_bounds = array<i64: 16, 16, 24>}]} {
    %cst = arith.constant 0.000000e+00 : f32
    %0 = vector.broadcast %cst : f32 to vector<18x18x24xf32>
    %c0 = arith.constant 0 : index
    %c0_0 = arith.constant 0 : index
    %c0_1 = arith.constant 0 : index
    %1 = vector.load %arg3[%c0, %c0_0, %c0_1] : memref<18x18x24xf32, #tpu.memory_space<vmem>>, vector<18x18x24xf32>
    tpu.vector_store %arg3[%c0, %c0_0, %c0_1], %0 {strides = array<i32>} : memref<18x18x24xf32, #tpu.memory_space<vmem>>, vector<18x18x24xf32>,
    %c0_2 = arith.constant 0 : index
    %c0_3 = arith.constant 0 : index
    %c0_4 = arith.constant 0 : index
    %2 = vector.load %arg1[%c0_2, %c0_3, %c0_4] : memref<16x16x24xf32, #tpu.memory_space<vmem>>, vector<16x16x24xf32>
    %c1 = arith.constant 1 : index
    %c1_5 = arith.constant 1 : index
    %c0_6 = arith.constant 0 : index
    %3 = vector.load %arg3[%c1, %c1_5, %c0_6] : memref<18x18x24xf32, #tpu.memory_space<vmem>>, vector<16x16x24xf32>
    tpu.vector_store %arg3[%c1, %c1_5, %c0_6], %2 {strides = array<i32>} : memref<18x18x24xf32, #tpu.memory_space<vmem>>, vector<16x16x24xf32>,
    %c0_7 = arith.constant 0 : index
    %c0_8 = arith.constant 0 : index
    %c0_9 = arith.constant 0 : index
    %4 = vector.load %arg3[%c0_7, %c0_8, %c0_9] : memref<18x18x24xf32, #tpu.memory_space<vmem>>, vector<16x18x24xf32>
    %c1_10 = arith.constant 1 : index
    %c0_11 = arith.constant 0 : index
    %c0_12 = arith.constant 0 : index
    %5 = vector.load %arg3[%c1_10, %c0_11, %c0_12] : memref<18x18x24xf32, #tpu.memory_space<vmem>>, vector<16x18x24xf32>
    %6 = arith.maximumf %4, %5 : vector<16x18x24xf32>
    %c2 = arith.constant 2 : index
    %c0_13 = arith.constant 0 : index
    %c0_14 = arith.constant 0 : index
    %7 = vector.load %arg3[%c2, %c0_13, %c0_14] : memref<18x18x24xf32, #tpu.memory_space<vmem>>, vector<16x18x24xf32>
    %8 = arith.maximumf %6, %7 : vector<16x18x24xf32>
    %c0_15 = arith.constant 0 : index
    %c0_16 = arith.constant 0 : index
    %c0_17 = arith.constant 0 : index
    %9 = vector.load %arg4[%c0_15, %c0_16, %c0_17] : memref<16x18x24xf32, #tpu.memory_space<vmem>>, vector<16x18x24xf32>
    tpu.vector_store %arg4[%c0_15, %c0_16, %c0_17], %8 {strides = array<i32>} : memref<16x18x24xf32, #tpu.memory_space<vmem>>, vector<16x18x24xf32>,
    %c0_18 = arith.constant 0 : index
    %c0_19 = arith.constant 0 : index
    %c0_20 = arith.constant 0 : index
    %10 = vector.load %arg4[%c0_18, %c0_19, %c0_20] : memref<16x18x24xf32, #tpu.memory_space<vmem>>, vector<16x16x24xf32>
    %c0_21 = arith.constant 0 : index
    %c1_22 = arith.constant 1 : index
    %c0_23 = arith.constant 0 : index
    %11 = vector.load %arg4[%c0_21, %c1_22, %c0_23] : memref<16x18x24xf32, #tpu.memory_space<vmem>>, vector<16x16x24xf32>
    %12 = arith.maximumf %10, %11 : vector<16x16x24xf32>
    %c0_24 = arith.constant 0 : index
    %c2_25 = arith.constant 2 : index
    %c0_26 = arith.constant 0 : index
    %13 = vector.load %arg4[%c0_24, %c2_25, %c0_26] : memref<16x18x24xf32, #tpu.memory_space<vmem>>, vector<16x16x24xf32>
    %14 = arith.maximumf %12, %13 : vector<16x16x24xf32>
    %c0_27 = arith.constant 0 : index
    %c0_28 = arith.constant 0 : index
    %c0_29 = arith.constant 0 : index
    %15 = vector.load %arg2[%c0_27, %c0_28, %c0_29] : memref<16x16x24xf32, #tpu.memory_space<vmem>>, vector<16x16x24xf32>
    tpu.vector_store %arg2[%c0_27, %c0_28, %c0_29], %14 {strides = array<i32>} : memref<16x16x24xf32, #tpu.memory_space<vmem>>, vector<16x16x24xf32>,
    return
  }
  func.func @transform_0(%arg0: i32) -> (i32, i32, i32) {
    %c0_i32 = arith.constant 0 : i32
    %c0_i32_0 = arith.constant 0 : i32
    %c0_i32_1 = arith.constant 0 : i32
    return %c0_i32, %c0_i32_0, %arg0 : i32, i32, i32
  }
  func.func @transform_1(%arg0: i32) -> (i32, i32, i32) {
    %c0_i32 = arith.constant 0 : i32
    %c0_i32_0 = arith.constant 0 : i32
    %c0_i32_1 = arith.constant 0 : i32
    return %c0_i32, %c0_i32_0, %arg0 : i32, i32, i32
  }
}

</mosaic_0001>

<llo_original>
// kernel: tpu_custom_call.1
$region0: #{tpu_custom_call.1}
  #allocation0 [shape = 'u32[]', space=smem, size = 0x4, offset = 0x4, fixed_abs, tag = 'smem constant byte address 0x4 - core index']
  #allocation1 [shape = 'u32[144,128]{1,0:T(1,128)}', space=vmem, size = 0x12000, scoped, tag = 'internal scratch']
  #allocation2 [shape = 'f32[18,18,24]{2,1,0:T(8,128)}', space=vmem, size = 0x36000, scoped, tag = 'scratch operand']
  #allocation3 [shape = 'f32[16,18,24]{2,1,0:T(8,128)}', space=vmem, size = 0x30000, scoped, tag = 'scratch operand']
  %s0 = inlined_call_operand.hbm [shape: f32[16,16,24], index: 0, kind: input, shape index: {}]
  %s1 = inlined_call_operand.hbm [shape: f32[16,16,24], index: 1, kind: output, shape index: {}]
  %s2 = sld [smem:[#allocation0]]
  $region18: #{tpu_custom_call.1} parent=0
    _
  %s4 = ssub.s32 1, %s2
  %s5 = scalar_select 0, %s4, %s2
  $region1: #{tpu_custom_call.1} parent=0
    #allocation4 [shape = 'u8[131072]{0}', space=vmem, size = 0x20000, scoped, tag = 'input window, operand 0, single buffered']
    #allocation5 [shape = 's32[1]{0}', space=sflag, size = 0x4, scoped, tag = 'scoped memory for tpu_custom_call.1']
    #allocation6 [shape = 's32[1]{0}', space=sflag, size = 0x4, scoped, tag = 'scoped memory for tpu_custom_call.1']
    #allocation7 [shape = 'u8[131072]{0}', space=vmem, size = 0x20000, scoped, tag = 'output window, operand 0, single buffered']
    %6 = vsyncpa [#allocation5], 0
    %7 = vsyncpa [#allocation6], 0
    // Predicated region
    $region2: #{tpu_custom_call.1} parent=1 // pred_check
      _
    $region3: #{tpu_custom_call.1} parent=1 // pred_check_branch
      %9 = sbr.rel (0) target = $region5
    $region4: #{tpu_custom_call.1} parent=1 // pred_region
      %s11 = ssub.s32 4096, 4096
      %12 = vsyncadd [#allocation5], %s11
      %s13 = sshll.u32 [#allocation4], 4
      %s14 = int_to_ptr.vmem [resolvable:$true] %s13
      %19 = dma.hbm_to_vmem [thread:$0]  %s0, 4096, %s14, [#allocation5], 128, 128, 8
    $region5: #{tpu_custom_call.1} parent=1 // pred_fallthru
      _
    // Predicated region
    $region6: #{tpu_custom_call.1} parent=1 // pred_check
      _
    $region7: #{tpu_custom_call.1} parent=1 // pred_check_branch
      %21 = sbr.rel (0) target = $region9
    $region8: #{tpu_custom_call.1} parent=1 // pred_region
      %22 = dma.done [#allocation5], 4096
    $region9: #{tpu_custom_call.1} parent=1 // pred_fallthru
      _
    %vm23 = vcmask 195584
    %24 = vst.msk [vmem:[#allocation2] sm:$0xff] %vm23, 0.0
    %25 = vst.msk [vmem:[#allocation2 + $0x8] sm:$0xff] %vm23, 0.0
    %vm26 = vcmask 189440
    %27 = vst.msk [vmem:[#allocation2 + $0x10] sm:$0x3] %vm26, 0.0
    %28 = vst.msk [vmem:[#allocation2 + $0x18] sm:$0xff] %vm23, 0.0
    %29 = vst.msk [vmem:[#allocation2 + $0x20] sm:$0xff] %vm23, 0.0
    %30 = vst.msk [vmem:[#allocation2 + $0x28] sm:$0x3] %vm26, 0.0
    %31 = vst.msk [vmem:[#allocation2 + $0x30] sm:$0xff] %vm23, 0.0
    %32 = vst.msk [vmem:[#allocation2 + $0x38] sm:$0xff] %vm23, 0.0
    %33 = vst.msk [vmem:[#allocation2 + $0x40] sm:$0x3] %vm26, 0.0
    %34 = vst.msk [vmem:[#allocation2 + $0x48] sm:$0xff] %vm23, 0.0
    %35 = vst.msk [vmem:[#allocation2 + $0x50] sm:$0xff] %vm23, 0.0
    %36 = vst.msk [vmem:[#allocation2 + $0x58] sm:$0x3] %vm26, 0.0
    %37 = vst.msk [vmem:[#allocation2 + $0x60] sm:$0xff] %vm23, 0.0
    %38 = vst.msk [vmem:[#allocation2 + $0x68] sm:$0xff] %vm23, 0.0
    %39 = vst.msk [vmem:[#allocation2 + $0x70] sm:$0x3] %vm26, 0.0
    %40 = vst.msk [vmem:[#allocation2 + $0x78] sm:$0xff] %vm23, 0.0
    %41 = vst.msk [vmem:[#allocation2 + $0x80] sm:$0xff] %vm23, 0.0
    %42 = vst.msk [vmem:[#allocation2 + $0x88] sm:$0x3] %vm26, 0.0
    %43 = vst.msk [vmem:[#allocation2 + $0x90] sm:$0xff] %vm23, 0.0
    %44 = vst.msk [vmem:[#allocation2 + $0x98] sm:$0xff] %vm23, 0.0
    %45 = vst.msk [vmem:[#allocation2 + $0xa0] sm:$0x3] %vm26, 0.0
    %46 = vst.msk [vmem:[#allocation2 + $0xa8] sm:$0xff] %vm23, 0.0
    %47 = vst.msk [vmem:[#allocation2 + $0xb0] sm:$0xff] %vm23, 0.0
    %48 = vst.msk [vmem:[#allocation2 + $0xb8] sm:$0x3] %vm26, 0.0
    %49 = vst.msk [vmem:[#allocation2 + $0xc0] sm:$0xff] %vm23, 0.0
    %50 = vst.msk [vmem:[#allocation2 + $0xc8] sm:$0xff] %vm23, 0.0
    %51 = vst.msk [vmem:[#allocation2 + $0xd0] sm:$0x3] %vm26, 0.0
    %52 = vst.msk [vmem:[#allocation2 + $0xd8] sm:$0xff] %vm23, 0.0
    %53 = vst.msk [vmem:[#allocation2 + $0xe0] sm:$0xff] %vm23, 0.0
    %54 = vst.msk [vmem:[#allocation2 + $0xe8] sm:$0x3] %vm26, 0.0
    %55 = vst.msk [vmem:[#allocation2 + $0xf0] sm:$0xff] %vm23, 0.0
    %56 = vst.msk [vmem:[#allocation2 + $0xf8] sm:$0xff] %vm23, 0.0
    %57 = vst.msk [vmem:[#allocation2 + $0x100] sm:$0x3] %vm26, 0.0
    %58 = vst.msk [vmem:[#allocation2 + $0x108] sm:$0xff] %vm23, 0.0
    %59 = vst.msk [vmem:[#allocation2 + $0x110] sm:$0xff] %vm23, 0.0
    %60 = vst.msk [vmem:[#allocation2 + $0x118] sm:$0x3] %vm26, 0.0
    %61 = vst.msk [vmem:[#allocation2 + $0x120] sm:$0xff] %vm23, 0.0
    %62 = vst.msk [vmem:[#allocation2 + $0x128] sm:$0xff] %vm23, 0.0
    %63 = vst.msk [vmem:[#allocation2 + $0x130] sm:$0x3] %vm26, 0.0
    %64 = vst.msk [vmem:[#allocation2 + $0x138] sm:$0xff] %vm23, 0.0
    %65 = vst.msk [vmem:[#allocation2 + $0x140] sm:$0xff] %vm23, 0.0
    %66 = vst.msk [vmem:[#allocation2 + $0x148] sm:$0x3] %vm26, 0.0
    %67 = vst.msk [vmem:[#allocation2 + $0x150] sm:$0xff] %vm23, 0.0
    %68 = vst.msk [vmem:[#allocation2 + $0x158] sm:$0xff] %vm23, 0.0
    %69 = vst.msk [vmem:[#allocation2 + $0x160] sm:$0x3] %vm26, 0.0
    %70 = vst.msk [vmem:[#allocation2 + $0x168] sm:$0xff] %vm23, 0.0
    %71 = vst.msk [vmem:[#allocation2 + $0x170] sm:$0xff] %vm23, 0.0
    %72 = vst.msk [vmem:[#allocation2 + $0x178] sm:$0x3] %vm26, 0.0
    %73 = vst.msk [vmem:[#allocation2 + $0x180] sm:$0xff] %vm23, 0.0
    %74 = vst.msk [vmem:[#allocation2 + $0x188] sm:$0xff] %vm23, 0.0
    %75 = vst.msk [vmem:[#allocation2 + $0x190] sm:$0x3] %vm26, 0.0
    %76 = vst.msk [vmem:[#allocation2 + $0x198] sm:$0xff] %vm23, 0.0
    %77 = vst.msk [vmem:[#allocation2 + $0x1a0] sm:$0xff] %vm23, 0.0
    %78 = vst.msk [vmem:[#allocation2 + $0x1a8] sm:$0x3] %vm26, 0.0
    %v79 = vld [vmem:[#allocation4] sm:$0xff]
    %v80 = vld [vmem:[#allocation4 + $0x8] sm:$0xff]
    %v81 = vld [vmem:[#allocation4 + $0x10] sm:$0xff]
    %v82 = vld [vmem:[#allocation4 + $0x18] sm:$0xff]
    %v83 = vld [vmem:[#allocation4 + $0x20] sm:$0xff]
    %v84 = vld [vmem:[#allocation4 + $0x28] sm:$0xff]
    %v85 = vld [vmem:[#allocation4 + $0x30] sm:$0xff]
    %v86 = vld [vmem:[#allocation4 + $0x38] sm:$0xff]
    %v87 = vld [vmem:[#allocation4 + $0x40] sm:$0xff]
    %v88 = vld [vmem:[#allocation4 + $0x48] sm:$0xff]
    %v89 = vld [vmem:[#allocation4 + $0x50] sm:$0xff]
    %v90 = vld [vmem:[#allocation4 + $0x58] sm:$0xff]
    %v91 = vld [vmem:[#allocation4 + $0x60] sm:$0xff]
    %v92 = vld [vmem:[#allocation4 + $0x68] sm:$0xff]
    %v93 = vld [vmem:[#allocation4 + $0x70] sm:$0xff]
    %v94 = vld [vmem:[#allocation4 + $0x78] sm:$0xff]
    %v95 = vld [vmem:[#allocation4 + $0x80] sm:$0xff]
    %v96 = vld [vmem:[#allocation4 + $0x88] sm:$0xff]
    %v97 = vld [vmem:[#allocation4 + $0x90] sm:$0xff]
    %v98 = vld [vmem:[#allocation4 + $0x98] sm:$0xff]
    %v99 = vld [vmem:[#allocation4 + $0xa0] sm:$0xff]
    %v100 = vld [vmem:[#allocation4 + $0xa8] sm:$0xff]
    %v101 = vld [vmem:[#allocation4 + $0xb0] sm:$0xff]
    %v102 = vld [vmem:[#allocation4 + $0xb8] sm:$0xff]
    %v103 = vld [vmem:[#allocation4 + $0xc0] sm:$0xff]
    %v104 = vld [vmem:[#allocation4 + $0xc8] sm:$0xff]
    %v105 = vld [vmem:[#allocation4 + $0xd0] sm:$0xff]
    %v106 = vld [vmem:[#allocation4 + $0xd8] sm:$0xff]
    %v107 = vld [vmem:[#allocation4 + $0xe0] sm:$0xff]
    %v108 = vld [vmem:[#allocation4 + $0xe8] sm:$0xff]
    %v109 = vld [vmem:[#allocation4 + $0xf0] sm:$0xff]
    %v110 = vld [vmem:[#allocation4 + $0xf8] sm:$0xff]
    %s111 = scalar_lea.vmem [#allocation2], 24
    %112 = vst.msk [vmem:[%s111 + $0x1] sm:$0xff] %vm23, %v79
    %113 = vst.msk [vmem:[%s111 + $0x9] sm:$0xff] %vm23, %v80
    %114 = vst.msk [vmem:[%s111 + $0x19] sm:$0xff] %vm23, %v81
    %115 = vst.msk [vmem:[%s111 + $0x21] sm:$0xff] %vm23, %v82
    %116 = vst.msk [vmem:[%s111 + $0x31] sm:$0xff] %vm23, %v83
    %117 = vst.msk [vmem:[%s111 + $0x39] sm:$0xff] %vm23, %v84
    %118 = vst.msk [vmem:[%s111 + $0x49] sm:$0xff] %vm23, %v85
    %119 = vst.msk [vmem:[%s111 + $0x51] sm:$0xff] %vm23, %v86
    %120 = vst.msk [vmem:[%s111 + $0x61] sm:$0xff] %vm23, %v87
    %121 = vst.msk [vmem:[%s111 + $0x69] sm:$0xff] %vm23, %v88
    %122 = vst.msk [vmem:[%s111 + $0x79] sm:$0xff] %vm23, %v89
    %123 = vst.msk [vmem:[%s111 + $0x81] sm:$0xff] %vm23, %v90
    %124 = vst.msk [vmem:[%s111 + $0x91] sm:$0xff] %vm23, %v91
    %125 = vst.msk [vmem:[%s111 + $0x99] sm:$0xff] %vm23, %v92
    %126 = vst.msk [vmem:[%s111 + $0xa9] sm:$0xff] %vm23, %v93
    %127 = vst.msk [vmem:[%s111 + $0xb1] sm:$0xff] %vm23, %v94
    %128 = vst.msk [vmem:[%s111 + $0xc1] sm:$0xff] %vm23, %v95
    %129 = vst.msk [vmem:[%s111 + $0xc9] sm:$0xff] %vm23, %v96
    %130 = vst.msk [vmem:[%s111 + $0xd9] sm:$0xff] %vm23, %v97
    %131 = vst.msk [vmem:[%s111 + $0xe1] sm:$0xff] %vm23, %v98
    %132 = vst.msk [vmem:[%s111 + $0xf1] sm:$0xff] %vm23, %v99
    %133 = vst.msk [vmem:[%s111 + $0xf9] sm:$0xff] %vm23, %v100
    %134 = vst.msk [vmem:[%s111 + $0x109] sm:$0xff] %vm23, %v101
    %135 = vst.msk [vmem:[%s111 + $0x111] sm:$0xff] %vm23, %v102
    %136 = vst.msk [vmem:[%s111 + $0x121] sm:$0xff] %vm23, %v103
    %137 = vst.msk [vmem:[%s111 + $0x129] sm:$0xff] %vm23, %v104
    %138 = vst.msk [vmem:[%s111 + $0x139] sm:$0xff] %vm23, %v105
    %139 = vst.msk [vmem:[%s111 + $0x141] sm:$0xff] %vm23, %v106
    %140 = vst.msk [vmem:[%s111 + $0x151] sm:$0xff] %vm23, %v107
    %141 = vst.msk [vmem:[%s111 + $0x159] sm:$0xff] %vm23, %v108
    %142 = vst.msk [vmem:[%s111 + $0x169] sm:$0xff] %vm23, %v109
    %143 = vst.msk [vmem:[%s111 + $0x171] sm:$0xff] %vm23, %v110
    %v144 = vld [vmem:[#allocation2] sm:$0xff]
    %v145 = vld [vmem:[#allocation2 + $0x8] sm:$0xff]
    %v146 = vld [vmem:[#allocation2 + $0x10] sm:$0x3]
    %v147 = vld [vmem:[#allocation2 + $0x18] sm:$0xff]
    %v148 = vld [vmem:[#allocation2 + $0x20] sm:$0xff]
    %v149 = vld [vmem:[#allocation2 + $0x28] sm:$0x3]
    %v150 = vld [vmem:[#allocation2 + $0x30] sm:$0xff]
    %v151 = vld [vmem:[#allocation2 + $0x38] sm:$0xff]
    %v152 = vld [vmem:[#allocation2 + $0x40] sm:$0x3]
    %v153 = vld [vmem:[#allocation2 + $0x48] sm:$0xff]
    %v154 = vld [vmem:[#allocation2 + $0x50] sm:$0xff]
    %v155 = vld [vmem:[#allocation2 + $0x58] sm:$0x3]
    %v156 = vld [vmem:[#allocation2 + $0x60] sm:$0xff]
    %v157 = vld [vmem:[#allocation2 + $0x68] sm:$0xff]
    %v158 = vld [vmem:[#allocation2 + $0x70] sm:$0x3]
    %v159 = vld [vmem:[#allocation2 + $0x78] sm:$0xff]
    %v160 = vld [vmem:[#allocation2 + $0x80] sm:$0xff]
    %v161 = vld [vmem:[#allocation2 + $0x88] sm:$0x3]
    %v162 = vld [vmem:[#allocation2 + $0x90] sm:$0xff]
    %v163 = vld [vmem:[#allocation2 + $0x98] sm:$0xff]
    %v164 = vld [vmem:[#allocation2 + $0xa0] sm:$0x3]
    %v165 = vld [vmem:[#allocation2 + $0xa8] sm:$0xff]
    %v166 = vld [vmem:[#allocation2 + $0xb0] sm:$0xff]
    %v167 = vld [vmem:[#allocation2 + $0xb8] sm:$0x3]
    %v168 = vld [vmem:[#allocation2 + $0xc0] sm:$0xff]
    %v169 = vld [vmem:[#allocation2 + $0xc8] sm:$0xff]
    %v170 = vld [vmem:[#allocation2 + $0xd0] sm:$0x3]
    %v171 = vld [vmem:[#allocation2 + $0xd8] sm:$0xff]
    %v172 = vld [vmem:[#allocation2 + $0xe0] sm:$0xff]
    %v173 = vld [vmem:[#allocation2 + $0xe8] sm:$0x3]
    %v174 = vld [vmem:[#allocation2 + $0xf0] sm:$0xff]
    %v175 = vld [vmem:[#allocation2 + $0xf8] sm:$0xff]
    %v176 = vld [vmem:[#allocation2 + $0x100] sm:$0x3]
    %v177 = vld [vmem:[#allocation2 + $0x108] sm:$0xff]
    %v178 = vld [vmem:[#allocation2 + $0x110] sm:$0xff]
    %v179 = vld [vmem:[#allocation2 + $0x118] sm:$0x3]
    %v180 = vld [vmem:[#allocation2 + $0x120] sm:$0xff]
    %v181 = vld [vmem:[#allocation2 + $0x128] sm:$0xff]
    %v182 = vld [vmem:[#allocation2 + $0x130] sm:$0x3]
    %v183 = vld [vmem:[#allocation2 + $0x138] sm:$0xff]
    %v184 = vld [vmem:[#allocation2 + $0x140] sm:$0xff]
    %v185 = vld [vmem:[#allocation2 + $0x148] sm:$0x3]
    %v186 = vld [vmem:[#allocation2 + $0x150] sm:$0xff]
    %v187 = vld [vmem:[#allocation2 + $0x158] sm:$0xff]
    %v188 = vld [vmem:[#allocation2 + $0x160] sm:$0x3]
    %v189 = vld [vmem:[#allocation2 + $0x168] sm:$0xff]
    %v190 = vld [vmem:[#allocation2 + $0x170] sm:$0xff]
    %v191 = vld [vmem:[#allocation2 + $0x178] sm:$0x3]
    %v192 = vld [vmem:[%s111] sm:$0xff]
    %v193 = vld [vmem:[%s111 + $0x8] sm:$0xff]
    %v194 = vld [vmem:[%s111 + $0x10] sm:$0x3]
    %v195 = vld [vmem:[%s111 + $0x18] sm:$0xff]
    %v196 = vld [vmem:[%s111 + $0x20] sm:$0xff]
    %v197 = vld [vmem:[%s111 + $0x28] sm:$0x3]
    %v198 = vld [vmem:[%s111 + $0x30] sm:$0xff]
    %v199 = vld [vmem:[%s111 + $0x38] sm:$0xff]
    %v200 = vld [vmem:[%s111 + $0x40] sm:$0x3]
    %v201 = vld [vmem:[%s111 + $0x48] sm:$0xff]
    %v202 = vld [vmem:[%s111 + $0x50] sm:$0xff]
    %v203 = vld [vmem:[%s111 + $0x58] sm:$0x3]
    %v204 = vld [vmem:[%s111 + $0x60] sm:$0xff]
    %v205 = vld [vmem:[%s111 + $0x68] sm:$0xff]
    %v206 = vld [vmem:[%s111 + $0x70] sm:$0x3]
    %v207 = vld [vmem:[%s111 + $0x78] sm:$0xff]
    %v208 = vld [vmem:[%s111 + $0x80] sm:$0xff]
    %v209 = vld [vmem:[%s111 + $0x88] sm:$0x3]
    %v210 = vld [vmem:[%s111 + $0x90] sm:$0xff]
    %v211 = vld [vmem:[%s111 + $0x98] sm:$0xff]
    %v212 = vld [vmem:[%s111 + $0xa0] sm:$0x3]
    %v213 = vld [vmem:[%s111 + $0xa8] sm:$0xff]
    %v214 = vld [vmem:[%s111 + $0xb0] sm:$0xff]
    %v215 = vld [vmem:[%s111 + $0xb8] sm:$0x3]
    %v216 = vld [vmem:[%s111 + $0xc0] sm:$0xff]
    %v217 = vld [vmem:[%s111 + $0xc8] sm:$0xff]
    %v218 = vld [vmem:[%s111 + $0xd0] sm:$0x3]
    %v219 = vld [vmem:[%s111 + $0xd8] sm:$0xff]
    %v220 = vld [vmem:[%s111 + $0xe0] sm:$0xff]
    %v221 = vld [vmem:[%s111 + $0xe8] sm:$0x3]
    %v222 = vld [vmem:[%s111 + $0xf0] sm:$0xff]
    %v223 = vld [vmem:[%s111 + $0xf8] sm:$0xff]
    %v224 = vld [vmem:[%s111 + $0x100] sm:$0x3]
    %v225 = vld [vmem:[%s111 + $0x108] sm:$0xff]
    %v226 = vld [vmem:[%s111 + $0x110] sm:$0xff]
    %v227 = vld [vmem:[%s111 + $0x118] sm:$0x3]
    %v228 = vld [vmem:[%s111 + $0x120] sm:$0xff]
    %v229 = vld [vmem:[%s111 + $0x128] sm:$0xff]
    %v230 = vld [vmem:[%s111 + $0x130] sm:$0x3]
    %v231 = vld [vmem:[%s111 + $0x138] sm:$0xff]
    %v232 = vld [vmem:[%s111 + $0x140] sm:$0xff]
    %v233 = vld [vmem:[%s111 + $0x148] sm:$0x3]
    %v234 = vld [vmem:[%s111 + $0x150] sm:$0xff]
    %v235 = vld [vmem:[%s111 + $0x158] sm:$0xff]
    %v236 = vld [vmem:[%s111 + $0x160] sm:$0x3]
    %v237 = vld [vmem:[%s111 + $0x168] sm:$0xff]
    %v238 = vld [vmem:[%s111 + $0x170] sm:$0xff]
    %v239 = vld [vmem:[%s111 + $0x178] sm:$0x3]
    %v240 = vmax.f32 %v144, %v192
    %v241 = vmax.f32 %v145, %v193
    %v242 = vmax.f32 %v146, %v194
    %v243 = vmax.f32 %v147, %v195
    %v244 = vmax.f32 %v148, %v196
    %v245 = vmax.f32 %v149, %v197
    %v246 = vmax.f32 %v150, %v198
    %v247 = vmax.f32 %v151, %v199
    %v248 = vmax.f32 %v152, %v200
    %v249 = vmax.f32 %v153, %v201
    %v250 = vmax.f32 %v154, %v202
    %v251 = vmax.f32 %v155, %v203
    %v252 = vmax.f32 %v156, %v204
    %v253 = vmax.f32 %v157, %v205
    %v254 = vmax.f32 %v158, %v206
    %v255 = vmax.f32 %v159, %v207
    %v256 = vmax.f32 %v160, %v208
    %v257 = vmax.f32 %v161, %v209
    %v258 = vmax.f32 %v162, %v210
    %v259 = vmax.f32 %v163, %v211
    %v260 = vmax.f32 %v164, %v212
    %v261 = vmax.f32 %v165, %v213
    %v262 = vmax.f32 %v166, %v214
    %v263 = vmax.f32 %v167, %v215
    %v264 = vmax.f32 %v168, %v216
    %v265 = vmax.f32 %v169, %v217
    %v266 = vmax.f32 %v170, %v218
    %v267 = vmax.f32 %v171, %v219
    %v268 = vmax.f32 %v172, %v220
    %v269 = vmax.f32 %v173, %v221
    %v270 = vmax.f32 %v174, %v222
    %v271 = vmax.f32 %v175, %v223
    %v272 = vmax.f32 %v176, %v224
    %v273 = vmax.f32 %v177, %v225
    %v274 = vmax.f32 %v178, %v226
    %v275 = vmax.f32 %v179, %v227
    %v276 = vmax.f32 %v180, %v228
    %v277 = vmax.f32 %v181, %v229
    %v278 = vmax.f32 %v182, %v230
    %v279 = vmax.f32 %v183, %v231
    %v280 = vmax.f32 %v184, %v232
    %v281 = vmax.f32 %v185, %v233
    %v282 = vmax.f32 %v186, %v234
    %v283 = vmax.f32 %v187, %v235
    %v284 = vmax.f32 %v188, %v236
    %v285 = vmax.f32 %v189, %v237
    %v286 = vmax.f32 %v190, %v238
    %v287 = vmax.f32 %v191, %v239
    %s288 = scalar_lea.vmem [#allocation2], 48
    %v289 = vld [vmem:[%s288] sm:$0xff]
    %v290 = vld [vmem:[%s288 + $0x8] sm:$0xff]
    %v291 = vld [vmem:[%s288 + $0x10] sm:$0x3]
    %v292 = vld [vmem:[%s288 + $0x18] sm:$0xff]
    %v293 = vld [vmem:[%s288 + $0x20] sm:$0xff]
    %v294 = vld [vmem:[%s288 + $0x28] sm:$0x3]
    %v295 = vld [vmem:[%s288 + $0x30] sm:$0xff]
    %v296 = vld [vmem:[%s288 + $0x38] sm:$0xff]
    %v297 = vld [vmem:[%s288 + $0x40] sm:$0x3]
    %v298 = vld [vmem:[%s288 + $0x48] sm:$0xff]
    %v299 = vld [vmem:[%s288 + $0x50] sm:$0xff]
    %v300 = vld [vmem:[%s288 + $0x58] sm:$0x3]
    %v301 = vld [vmem:[%s288 + $0x60] sm:$0xff]
    %v302 = vld [vmem:[%s288 + $0x68] sm:$0xff]
    %v303 = vld [vmem:[%s288 + $0x70] sm:$0x3]
    %v304 = vld [vmem:[%s288 + $0x78] sm:$0xff]
    %v305 = vld [vmem:[%s288 + $0x80] sm:$0xff]
    %v306 = vld [vmem:[%s288 + $0x88] sm:$0x3]
    %v307 = vld [vmem:[%s288 + $0x90] sm:$0xff]
    %v308 = vld [vmem:[%s288 + $0x98] sm:$0xff]
    %v309 = vld [vmem:[%s288 + $0xa0] sm:$0x3]
    %v310 = vld [vmem:[%s288 + $0xa8] sm:$0xff]
    %v311 = vld [vmem:[%s288 + $0xb0] sm:$0xff]
    %v312 = vld [vmem:[%s288 + $0xb8] sm:$0x3]
    %v313 = vld [vmem:[%s288 + $0xc0] sm:$0xff]
    %v314 = vld [vmem:[%s288 + $0xc8] sm:$0xff]
    %v315 = vld [vmem:[%s288 + $0xd0] sm:$0x3]
    %v316 = vld [vmem:[%s288 + $0xd8] sm:$0xff]
    %v317 = vld [vmem:[%s288 + $0xe0] sm:$0xff]
    %v318 = vld [vmem:[%s288 + $0xe8] sm:$0x3]
    %v319 = vld [vmem:[%s288 + $0xf0] sm:$0xff]
    %v320 = vld [vmem:[%s288 + $0xf8] sm:$0xff]
    %v321 = vld [vmem:[%s288 + $0x100] sm:$0x3]
    %v322 = vld [vmem:[%s288 + $0x108] sm:$0xff]
    %v323 = vld [vmem:[%s288 + $0x110] sm:$0xff]
    %v324 = vld [vmem:[%s288 + $0x118] sm:$0x3]
    %v325 = vld [vmem:[%s288 + $0x120] sm:$0xff]
    %v326 = vld [vmem:[%s288 + $0x128] sm:$0xff]
    %v327 = vld [vmem:[%s288 + $0x130] sm:$0x3]
    %v328 = vld [vmem:[%s288 + $0x138] sm:$0xff]
    %v329 = vld [vmem:[%s288 + $0x140] sm:$0xff]
    %v330 = vld [vmem:[%s288 + $0x148] sm:$0x3]
    %v331 = vld [vmem:[%s288 + $0x150] sm:$0xff]
    %v332 = vld [vmem:[%s288 + $0x158] sm:$0xff]
    %v333 = vld [vmem:[%s288 + $0x160] sm:$0x3]
    %v334 = vld [vmem:[%s288 + $0x168] sm:$0xff]
    %v335 = vld [vmem:[%s288 + $0x170] sm:$0xff]
    %v336 = vld [vmem:[%s288 + $0x178] sm:$0x3]
    %v337 = vmax.f32 %v240, %v289
    %v338 = vmax.f32 %v241, %v290
    %v339 = vmax.f32 %v242, %v291
    %v340 = vmax.f32 %v243, %v292
    %v341 = vmax.f32 %v244, %v293
    %v342 = vmax.f32 %v245, %v294
    %v343 = vmax.f32 %v246, %v295
    %v344 = vmax.f32 %v247, %v296
    %v345 = vmax.f32 %v248, %v297
    %v346 = vmax.f32 %v249, %v298
    %v347 = vmax.f32 %v250, %v299
    %v348 = vmax.f32 %v251, %v300
    %v349 = vmax.f32 %v252, %v301
    %v350 = vmax.f32 %v253, %v302
    %v351 = vmax.f32 %v254, %v303
    %v352 = vmax.f32 %v255, %v304
    %v353 = vmax.f32 %v256, %v305
    %v354 = vmax.f32 %v257, %v306
    %v355 = vmax.f32 %v258, %v307
    %v356 = vmax.f32 %v259, %v308
    %v357 = vmax.f32 %v260, %v309
    %v358 = vmax.f32 %v261, %v310
    %v359 = vmax.f32 %v262, %v311
    %v360 = vmax.f32 %v263, %v312
    %v361 = vmax.f32 %v264, %v313
    %v362 = vmax.f32 %v265, %v314
    %v363 = vmax.f32 %v266, %v315
    %v364 = vmax.f32 %v267, %v316
    %v365 = vmax.f32 %v268, %v317
    %v366 = vmax.f32 %v269, %v318
    %v367 = vmax.f32 %v270, %v319
    %v368 = vmax.f32 %v271, %v320
    %v369 = vmax.f32 %v272, %v321
    %v370 = vmax.f32 %v273, %v322
    %v371 = vmax.f32 %v274, %v323
    %v372 = vmax.f32 %v275, %v324
    %v373 = vmax.f32 %v276, %v325
    %v374 = vmax.f32 %v277, %v326
    %v375 = vmax.f32 %v278, %v327
    %v376 = vmax.f32 %v279, %v328
    %v377 = vmax.f32 %v280, %v329
    %v378 = vmax.f32 %v281, %v330
    %v379 = vmax.f32 %v282, %v331
    %v380 = vmax.f32 %v283, %v332
    %v381 = vmax.f32 %v284, %v333
    %v382 = vmax.f32 %v285, %v334
    %v383 = vmax.f32 %v286, %v335
    %v384 = vmax.f32 %v287, %v336
    %385 = vst.msk [vmem:[#allocation3] sm:$0xff] %vm23, %v337
    %386 = vst.msk [vmem:[#allocation3 + $0x8] sm:$0xff] %vm23, %v338
    %387 = vst.msk [vmem:[#allocation3 + $0x10] sm:$0x3] %vm26, %v339
    %388 = vst.msk [vmem:[#allocation3 + $0x18] sm:$0xff] %vm23, %v340
    %389 = vst.msk [vmem:[#allocation3 + $0x20] sm:$0xff] %vm23, %v341
    %390 = vst.msk [vmem:[#allocation3 + $0x28] sm:$0x3] %vm26, %v342
    %391 = vst.msk [vmem:[#allocation3 + $0x30] sm:$0xff] %vm23, %v343
    %392 = vst.msk [vmem:[#allocation3 + $0x38] sm:$0xff] %vm23, %v344
    %393 = vst.msk [vmem:[#allocation3 + $0x40] sm:$0x3] %vm26, %v345
    %394 = vst.msk [vmem:[#allocation3 + $0x48] sm:$0xff] %vm23, %v346
    %395 = vst.msk [vmem:[#allocation3 + $0x50] sm:$0xff] %vm23, %v347
    %396 = vst.msk [vmem:[#allocation3 + $0x58] sm:$0x3] %vm26, %v348
    %397 = vst.msk [vmem:[#allocation3 + $0x60] sm:$0xff] %vm23, %v349
    %398 = vst.msk [vmem:[#allocation3 + $0x68] sm:$0xff] %vm23, %v350
    %399 = vst.msk [vmem:[#allocation3 + $0x70] sm:$0x3] %vm26, %v351
    %400 = vst.msk [vmem:[#allocation3 + $0x78] sm:$0xff] %vm23, %v352
    %401 = vst.msk [vmem:[#allocation3 + $0x80] sm:$0xff] %vm23, %v353
    %402 = vst.msk [vmem:[#allocation3 + $0x88] sm:$0x3] %vm26, %v354
    %403 = vst.msk [vmem:[#allocation3 + $0x90] sm:$0xff] %vm23, %v355
    %404 = vst.msk [vmem:[#allocation3 + $0x98] sm:$0xff] %vm23, %v356
    %405 = vst.msk [vmem:[#allocation3 + $0xa0] sm:$0x3] %vm26, %v357
    %406 = vst.msk [vmem:[#allocation3 + $0xa8] sm:$0xff] %vm23, %v358
    %407 = vst.msk [vmem:[#allocation3 + $0xb0] sm:$0xff] %vm23, %v359
    %408 = vst.msk [vmem:[#allocation3 + $0xb8] sm:$0x3] %vm26, %v360
    %409 = vst.msk [vmem:[#allocation3 + $0xc0] sm:$0xff] %vm23, %v361
    %410 = vst.msk [vmem:[#allocation3 + $0xc8] sm:$0xff] %vm23, %v362
    %411 = vst.msk [vmem:[#allocation3 + $0xd0] sm:$0x3] %vm26, %v363
    %412 = vst.msk [vmem:[#allocation3 + $0xd8] sm:$0xff] %vm23, %v364
    %413 = vst.msk [vmem:[#allocation3 + $0xe0] sm:$0xff] %vm23, %v365
    %414 = vst.msk [vmem:[#allocation3 + $0xe8] sm:$0x3] %vm26, %v366
    %415 = vst.msk [vmem:[#allocation3 + $0xf0] sm:$0xff] %vm23, %v367
    %416 = vst.msk [vmem:[#allocation3 + $0xf8] sm:$0xff] %vm23, %v368
    %417 = vst.msk [vmem:[#allocation3 + $0x100] sm:$0x3] %vm26, %v369
    %418 = vst.msk [vmem:[#allocation3 + $0x108] sm:$0xff] %vm23, %v370
    %419 = vst.msk [vmem:[#allocation3 + $0x110] sm:$0xff] %vm23, %v371
    %420 = vst.msk [vmem:[#allocation3 + $0x118] sm:$0x3] %vm26, %v372
    %421 = vst.msk [vmem:[#allocation3 + $0x120] sm:$0xff] %vm23, %v373
    %422 = vst.msk [vmem:[#allocation3 + $0x128] sm:$0xff] %vm23, %v374
    %423 = vst.msk [vmem:[#allocation3 + $0x130] sm:$0x3] %vm26, %v375
    %424 = vst.msk [vmem:[#allocation3 + $0x138] sm:$0xff] %vm23, %v376
    %425 = vst.msk [vmem:[#allocation3 + $0x140] sm:$0xff] %vm23, %v377
    %426 = vst.msk [vmem:[#allocation3 + $0x148] sm:$0x3] %vm26, %v378
    %427 = vst.msk [vmem:[#allocation3 + $0x150] sm:$0xff] %vm23, %v379
    %428 = vst.msk [vmem:[#allocation3 + $0x158] sm:$0xff] %vm23, %v380
    %429 = vst.msk [vmem:[#allocation3 + $0x160] sm:$0x3] %vm26, %v381
    %430 = vst.msk [vmem:[#allocation3 + $0x168] sm:$0xff] %vm23, %v382
    %431 = vst.msk [vmem:[#allocation3 + $0x170] sm:$0xff] %vm23, %v383
    %432 = vst.msk [vmem:[#allocation3 + $0x178] sm:$0x3] %vm26, %v384
    %v433 = vld [vmem:[#allocation3] sm:$0xff]
    %v434 = vld [vmem:[#allocation3 + $0x8] sm:$0xff]
    %v435 = vld [vmem:[#allocation3 + $0x18] sm:$0xff]
    %v436 = vld [vmem:[#allocation3 + $0x20] sm:$0xff]
    %v437 = vld [vmem:[#allocation3 + $0x30] sm:$0xff]
    %v438 = vld [vmem:[#allocation3 + $0x38] sm:$0xff]
    %v439 = vld [vmem:[#allocation3 + $0x48] sm:$0xff]
    %v440 = vld [vmem:[#allocation3 + $0x50] sm:$0xff]
    %v441 = vld [vmem:[#allocation3 + $0x60] sm:$0xff]
    %v442 = vld [vmem:[#allocation3 + $0x68] sm:$0xff]
    %v443 = vld [vmem:[#allocation3 + $0x78] sm:$0xff]
    %v444 = vld [vmem:[#allocation3 + $0x80] sm:$0xff]
    %v445 = vld [vmem:[#allocation3 + $0x90] sm:$0xff]
    %v446 = vld [vmem:[#allocation3 + $0x98] sm:$0xff]
    %v447 = vld [vmem:[#allocation3 + $0xa8] sm:$0xff]
    %v448 = vld [vmem:[#allocation3 + $0xb0] sm:$0xff]
    %v449 = vld [vmem:[#allocation3 + $0xc0] sm:$0xff]
    %v450 = vld [vmem:[#allocation3 + $0xc8] sm:$0xff]
    %v451 = vld [vmem:[#allocation3 + $0xd8] sm:$0xff]
    %v452 = vld [vmem:[#allocation3 + $0xe0] sm:$0xff]
    %v453 = vld [vmem:[#allocation3 + $0xf0] sm:$0xff]
    %v454 = vld [vmem:[#allocation3 + $0xf8] sm:$0xff]
    %v455 = vld [vmem:[#allocation3 + $0x108] sm:$0xff]
    %v456 = vld [vmem:[#allocation3 + $0x110] sm:$0xff]
    %v457 = vld [vmem:[#allocation3 + $0x120] sm:$0xff]
    %v458 = vld [vmem:[#allocation3 + $0x128] sm:$0xff]
    %v459 = vld [vmem:[#allocation3 + $0x138] sm:$0xff]
    %v460 = vld [vmem:[#allocation3 + $0x140] sm:$0xff]
    %v461 = vld [vmem:[#allocation3 + $0x150] sm:$0xff]
    %v462 = vld [vmem:[#allocation3 + $0x158] sm:$0xff]
    %v463 = vld [vmem:[#allocation3 + $0x168] sm:$0xff]
    %v464 = vld [vmem:[#allocation3 + $0x170] sm:$0xff]
    %v465 = vld [vmem:[#allocation3 + $0x1] sm:$0xff]
    %v466 = vld [vmem:[#allocation3 + $0x9] sm:$0xff]
    %v467 = vld [vmem:[#allocation3 + $0x19] sm:$0xff]
    %v468 = vld [vmem:[#allocation3 + $0x21] sm:$0xff]
    %v469 = vld [vmem:[#allocation3 + $0x31] sm:$0xff]
    %v470 = vld [vmem:[#allocation3 + $0x39] sm:$0xff]
    %v471 = vld [vmem:[#allocation3 + $0x49] sm:$0xff]
    %v472 = vld [vmem:[#allocation3 + $0x51] sm:$0xff]
    %v473 = vld [vmem:[#allocation3 + $0x61] sm:$0xff]
    %v474 = vld [vmem:[#allocation3 + $0x69] sm:$0xff]
    %v475 = vld [vmem:[#allocation3 + $0x79] sm:$0xff]
    %v476 = vld [vmem:[#allocation3 + $0x81] sm:$0xff]
    %v477 = vld [vmem:[#allocation3 + $0x91] sm:$0xff]
    %v478 = vld [vmem:[#allocation3 + $0x99] sm:$0xff]
    %v479 = vld [vmem:[#allocation3 + $0xa9] sm:$0xff]
    %v480 = vld [vmem:[#allocation3 + $0xb1] sm:$0xff]
    %v481 = vld [vmem:[#allocation3 + $0xc1] sm:$0xff]
    %v482 = vld [vmem:[#allocation3 + $0xc9] sm:$0xff]
    %v483 = vld [vmem:[#allocation3 + $0xd9] sm:$0xff]
    %v484 = vld [vmem:[#allocation3 + $0xe1] sm:$0xff]
    %v485 = vld [vmem:[#allocation3 + $0xf1] sm:$0xff]
    %v486 = vld [vmem:[#allocation3 + $0xf9] sm:$0xff]
    %v487 = vld [vmem:[#allocation3 + $0x109] sm:$0xff]
    %v488 = vld [vmem:[#allocation3 + $0x111] sm:$0xff]
    %v489 = vld [vmem:[#allocation3 + $0x121] sm:$0xff]
    %v490 = vld [vmem:[#allocation3 + $0x129] sm:$0xff]
    %v491 = vld [vmem:[#allocation3 + $0x139] sm:$0xff]
    %v492 = vld [vmem:[#allocation3 + $0x141] sm:$0xff]
    %v493 = vld [vmem:[#allocation3 + $0x151] sm:$0xff]
    %v494 = vld [vmem:[#allocation3 + $0x159] sm:$0xff]
    %v495 = vld [vmem:[#allocation3 + $0x169] sm:$0xff]
    %v496 = vld [vmem:[#allocation3 + $0x171] sm:$0xff]
    %v497 = vmax.f32 %v433, %v465
    %v498 = vmax.f32 %v434, %v466
    %v499 = vmax.f32 %v435, %v467
    %v500 = vmax.f32 %v436, %v468
    %v501 = vmax.f32 %v437, %v469
    %v502 = vmax.f32 %v438, %v470
    %v503 = vmax.f32 %v439, %v471
    %v504 = vmax.f32 %v440, %v472
    %v505 = vmax.f32 %v441, %v473
    %v506 = vmax.f32 %v442, %v474
    %v507 = vmax.f32 %v443, %v475
    %v508 = vmax.f32 %v444, %v476
    %v509 = vmax.f32 %v445, %v477
    %v510 = vmax.f32 %v446, %v478
    %v511 = vmax.f32 %v447, %v479
    %v512 = vmax.f32 %v448, %v480
    %v513 = vmax.f32 %v449, %v481
    %v514 = vmax.f32 %v450, %v482
    %v515 = vmax.f32 %v451, %v483
    %v516 = vmax.f32 %v452, %v484
    %v517 = vmax.f32 %v453, %v485
    %v518 = vmax.f32 %v454, %v486
    %v519 = vmax.f32 %v455, %v487
    %v520 = vmax.f32 %v456, %v488
    %v521 = vmax.f32 %v457, %v489
    %v522 = vmax.f32 %v458, %v490
    %v523 = vmax.f32 %v459, %v491
    %v524 = vmax.f32 %v460, %v492
    %v525 = vmax.f32 %v461, %v493
    %v526 = vmax.f32 %v462, %v494
    %v527 = vmax.f32 %v463, %v495
    %v528 = vmax.f32 %v464, %v496
    %v529 = vld [vmem:[#allocation3 + $0x2] sm:$0xff]
    %v530 = vld [vmem:[#allocation3 + $0xa] sm:$0xff]
    %v531 = vld [vmem:[#allocation3 + $0x1a] sm:$0xff]
    %v532 = vld [vmem:[#allocation3 + $0x22] sm:$0xff]
    %v533 = vld [vmem:[#allocation3 + $0x32] sm:$0xff]
    %v534 = vld [vmem:[#allocation3 + $0x3a] sm:$0xff]
    %v535 = vld [vmem:[#allocation3 + $0x4a] sm:$0xff]
    %v536 = vld [vmem:[#allocation3 + $0x52] sm:$0xff]
    %v537 = vld [vmem:[#allocation3 + $0x62] sm:$0xff]
    %v538 = vld [vmem:[#allocation3 + $0x6a] sm:$0xff]
    %v539 = vld [vmem:[#allocation3 + $0x7a] sm:$0xff]
    %v540 = vld [vmem:[#allocation3 + $0x82] sm:$0xff]
    %v541 = vld [vmem:[#allocation3 + $0x92] sm:$0xff]
    %v542 = vld [vmem:[#allocation3 + $0x9a] sm:$0xff]
    %v543 = vld [vmem:[#allocation3 + $0xaa] sm:$0xff]
    %v544 = vld [vmem:[#allocation3 + $0xb2] sm:$0xff]
    %v545 = vld [vmem:[#allocation3 + $0xc2] sm:$0xff]
    %v546 = vld [vmem:[#allocation3 + $0xca] sm:$0xff]
    %v547 = vld [vmem:[#allocation3 + $0xda] sm:$0xff]
    %v548 = vld [vmem:[#allocation3 + $0xe2] sm:$0xff]
    %v549 = vld [vmem:[#allocation3 + $0xf2] sm:$0xff]
    %v550 = vld [vmem:[#allocation3 + $0xfa] sm:$0xff]
    %v551 = vld [vmem:[#allocation3 + $0x10a] sm:$0xff]
    %v552 = vld [vmem:[#allocation3 + $0x112] sm:$0xff]
    %v553 = vld [vmem:[#allocation3 + $0x122] sm:$0xff]
    %v554 = vld [vmem:[#allocation3 + $0x12a] sm:$0xff]
    %v555 = vld [vmem:[#allocation3 + $0x13a] sm:$0xff]
    %v556 = vld [vmem:[#allocation3 + $0x142] sm:$0xff]
    %v557 = vld [vmem:[#allocation3 + $0x152] sm:$0xff]
    %v558 = vld [vmem:[#allocation3 + $0x15a] sm:$0xff]
    %v559 = vld [vmem:[#allocation3 + $0x16a] sm:$0xff]
    %v560 = vld [vmem:[#allocation3 + $0x172] sm:$0xff]
    %v561 = vmax.f32 %v497, %v529
    %v562 = vmax.f32 %v498, %v530
    %v563 = vmax.f32 %v499, %v531
    %v564 = vmax.f32 %v500, %v532
    %v565 = vmax.f32 %v501, %v533
    %v566 = vmax.f32 %v502, %v534
    %v567 = vmax.f32 %v503, %v535
    %v568 = vmax.f32 %v504, %v536
    %v569 = vmax.f32 %v505, %v537
    %v570 = vmax.f32 %v506, %v538
    %v571 = vmax.f32 %v507, %v539
    %v572 = vmax.f32 %v508, %v540
    %v573 = vmax.f32 %v509, %v541
    %v574 = vmax.f32 %v510, %v542
    %v575 = vmax.f32 %v511, %v543
    %v576 = vmax.f32 %v512, %v544
    %v577 = vmax.f32 %v513, %v545
    %v578 = vmax.f32 %v514, %v546
    %v579 = vmax.f32 %v515, %v547
    %v580 = vmax.f32 %v516, %v548
    %v581 = vmax.f32 %v517, %v549
    %v582 = vmax.f32 %v518, %v550
    %v583 = vmax.f32 %v519, %v551
    %v584 = vmax.f32 %v520, %v552
    %v585 = vmax.f32 %v521, %v553
    %v586 = vmax.f32 %v522, %v554
    %v587 = vmax.f32 %v523, %v555
    %v588 = vmax.f32 %v524, %v556
    %v589 = vmax.f32 %v525, %v557
    %v590 = vmax.f32 %v526, %v558
    %v591 = vmax.f32 %v527, %v559
    %v592 = vmax.f32 %v528, %v560
    %593 = vst.msk [vmem:[#allocation7] sm:$0xff] %vm23, %v561
    %594 = vst.msk [vmem:[#allocation7 + $0x8] sm:$0xff] %vm23, %v562
    %595 = vst.msk [vmem:[#allocation7 + $0x10] sm:$0xff] %vm23, %v563
    %596 = vst.msk [vmem:[#allocation7 + $0x18] sm:$0xff] %vm23, %v564
    %597 = vst.msk [vmem:[#allocation7 + $0x20] sm:$0xff] %vm23, %v565
    %598 = vst.msk [vmem:[#allocation7 + $0x28] sm:$0xff] %vm23, %v566
    %599 = vst.msk [vmem:[#allocation7 + $0x30] sm:$0xff] %vm23, %v567
    %600 = vst.msk [vmem:[#allocation7 + $0x38] sm:$0xff] %vm23, %v568
    %601 = vst.msk [vmem:[#allocation7 + $0x40] sm:$0xff] %vm23, %v569
    %602 = vst.msk [vmem:[#allocation7 + $0x48] sm:$0xff] %vm23, %v570
    %603 = vst.msk [vmem:[#allocation7 + $0x50] sm:$0xff] %vm23, %v571
    %604 = vst.msk [vmem:[#allocation7 + $0x58] sm:$0xff] %vm23, %v572
    %605 = vst.msk [vmem:[#allocation7 + $0x60] sm:$0xff] %vm23, %v573
    %606 = vst.msk [vmem:[#allocation7 + $0x68] sm:$0xff] %vm23, %v574
    %607 = vst.msk [vmem:[#allocation7 + $0x70] sm:$0xff] %vm23, %v575
    %608 = vst.msk [vmem:[#allocation7 + $0x78] sm:$0xff] %vm23, %v576
    %609 = vst.msk [vmem:[#allocation7 + $0x80] sm:$0xff] %vm23, %v577
    %610 = vst.msk [vmem:[#allocation7 + $0x88] sm:$0xff] %vm23, %v578
    %611 = vst.msk [vmem:[#allocation7 + $0x90] sm:$0xff] %vm23, %v579
    %612 = vst.msk [vmem:[#allocation7 + $0x98] sm:$0xff] %vm23, %v580
    %613 = vst.msk [vmem:[#allocation7 + $0xa0] sm:$0xff] %vm23, %v581
    %614 = vst.msk [vmem:[#allocation7 + $0xa8] sm:$0xff] %vm23, %v582
    %615 = vst.msk [vmem:[#allocation7 + $0xb0] sm:$0xff] %vm23, %v583
    %616 = vst.msk [vmem:[#allocation7 + $0xb8] sm:$0xff] %vm23, %v584
    %617 = vst.msk [vmem:[#allocation7 + $0xc0] sm:$0xff] %vm23, %v585
    %618 = vst.msk [vmem:[#allocation7 + $0xc8] sm:$0xff] %vm23, %v586
    %619 = vst.msk [vmem:[#allocation7 + $0xd0] sm:$0xff] %vm23, %v587
    %620 = vst.msk [vmem:[#allocation7 + $0xd8] sm:$0xff] %vm23, %v588
    %621 = vst.msk [vmem:[#allocation7 + $0xe0] sm:$0xff] %vm23, %v589
    %622 = vst.msk [vmem:[#allocation7 + $0xe8] sm:$0xff] %vm23, %v590
    %623 = vst.msk [vmem:[#allocation7 + $0xf0] sm:$0xff] %vm23, %v591
    %624 = vst.msk [vmem:[#allocation7 + $0xf8] sm:$0xff] %vm23, %v592
    // Predicated region
    $region10: #{tpu_custom_call.1} parent=1 // pred_check
      _
    $region11: #{tpu_custom_call.1} parent=1 // pred_check_branch
      %626 = sbr.rel (0) target = $region13
    $region12: #{tpu_custom_call.1} parent=1 // pred_region
      %s628 = ssub.s32 4096, 4096
      %629 = vsyncadd [#allocation6], %s628
      %s630 = sshll.u32 [#allocation7], 4
      %s631 = int_to_ptr.vmem [resolvable:$true] %s630
      %636 = dma.vmem_to_hbm [thread:$0]  %s631, 4096, %s1, [#allocation6], 128, 128, 8
    $region13: #{tpu_custom_call.1} parent=1 // pred_fallthru
      _
    // Predicated region
    $region14: #{tpu_custom_call.1} parent=1 // pred_check
      _
    $region15: #{tpu_custom_call.1} parent=1 // pred_check_branch
      %638 = sbr.rel (0) target = $region17
    $region16: #{tpu_custom_call.1} parent=1 // pred_region
      %639 = dma.done [#allocation6], 4096
    $region17: #{tpu_custom_call.1} parent=1 // pred_fallthru
      _
    %640 = vsyncpa [#allocation5], 1
    %641 = vsyncpa [#allocation6], 1

</llo_original>
